<compile_context>
chip_gen: v6e
topology: v6e:2x2x1
jax: 0.10.0
libtpu: 0.0.40
codegen_flags: <defaults>
</compile_context>

<pallas_src>
import math

import jax
import jax.numpy as jnp
from jax.experimental import pallas as pl
from jax.experimental.pallas import tpu as pltpu

_LANE = 128


def _round_up(n, m):
    return ((n + m - 1) // m) * m


# ---------------------------------------------------------------------------
# Kernels
# ---------------------------------------------------------------------------

def _lambda_train_kernel(x_ref, w_ref, b_ref, eps_ref, out_ref):
    """Fused forward: y = x @ [Wm|Wv] + [bm|bv]; z = eps*exp(0.5*logvar) + mean.

    out_ref packs [z, mean, logvar] along axis 0 as a lane-dense [3, Bb, LP] slab.
    """
    lp = out_ref.shape[-1]                              # padded latent width (x128)
    y = jnp.dot(x_ref[...], w_ref[...],
                preferred_element_type=jnp.float32) + b_ref[...]   # [Bb, 2*LP]
    mean = y[:, :lp]                                    # tile-aligned slices
    logvar = y[:, lp:]
    z = eps_ref[...] * jnp.exp(0.5 * logvar) + mean     # exp -> EUP slot
    out_ref[0, :, :] = z.astype(out_ref.dtype)
    out_ref[1, :, :] = mean.astype(out_ref.dtype)
    out_ref[2, :, :] = logvar.astype(out_ref.dtype)


def _lambda_eval_kernel(x_ref, w_ref, b_ref, out_ref):
    """Eval mode: mean/logvar only — no eps DMA stream, no exp/reparam tail."""
    lp = out_ref.shape[-1]
    y = jnp.dot(x_ref[...], w_ref[...],
                preferred_element_type=jnp.float32) + b_ref[...]
    out_ref[0, :, :] = y[:, :lp].astype(out_ref.dtype)
    out_ref[1, :, :] = y[:, lp:].astype(out_ref.dtype)


# ---------------------------------------------------------------------------
# One-time parameter layout (hoisted out of the per-call hot path)
# ---------------------------------------------------------------------------

def prepare_lambda_params(w_mean, b_mean, w_logvar, b_logvar):
    """Pack the two nn.Linear layers into a fused, lane-padded weight/bias.

    w_*: [L, H] (PyTorch nn.Linear layout), b_*: [L].
    Returns w_cat [H, 2*LP] (mean block first, logvar block second), b_cat [1, 2*LP].
    """
    L, H = w_mean.shape
    LP = _round_up(L, _LANE)

    def pad_w(w):   # [L, H] -> [H, LP], zero-padded columns
        wt = jnp.asarray(w, jnp.float32).T
        return jnp.zeros((H, LP), jnp.float32).at[:, :L].set(wt)

    def pad_b(b):   # [L] -> [LP]
        return jnp.zeros((LP,), jnp.float32).at[:L].set(jnp.asarray(b, jnp.float32))

    w_cat = jnp.concatenate([pad_w(w_mean), pad_w(w_logvar)], axis=1)   # [H, 2*LP]
    b_cat = jnp.concatenate([pad_b(b_mean), pad_b(b_logvar)]).reshape(1, 2 * LP)
    return {"w_cat": w_cat, "b_cat": b_cat,
            "hidden": H, "latent": L, "latent_padded": LP}


# ---------------------------------------------------------------------------
# Forward wrapper
# ---------------------------------------------------------------------------

def lambda_forward(x, params, key=None, training=True, block_b=256):
    """Forward pass of the Lambda module.

    training=True : returns (z, latent_mean, latent_logvar),
                    z = eps * exp(0.5*logvar) + mean, eps ~ N(0,1) drawn from `key`.
    training=False: returns (latent_mean, latent_logvar); forward output is mean.
    """
    w_cat = params["w_cat"]
    b_cat = params["b_cat"]
    L = params["latent"]
    LP = params["latent_padded"]
    H = params["hidden"]

    x = jnp.asarray(x, jnp.float32)
    B = x.shape[0]

    # Batch tiling: whole-B block for small batches; `block_b`-row tiles with a
    # "parallel" grid axis when the batch divides evenly (lets v7x's 2 TCs split
    # the work; harmless no-op on v5e/v6e). block_b=256 keeps per-step VMEM
    # footprint (~1 MiB double-buffered) far under v7x's 32 MiB scoped default.
    bb = block_b if (B > block_b and B % block_b == 0) else B
    nb = B // bb

    x_spec = pl.BlockSpec((bb, H), lambda i: (i, 0))
    w_spec = pl.BlockSpec((H, 2 * LP), lambda i: (0, 0))   # constant -> VMEM-resident
    b_spec = pl.BlockSpec((1, 2 * LP), lambda i: (0, 0))
    cparams = pltpu.CompilerParams(dimension_semantics=("parallel",))

    if training:
        if key is None:
            raise ValueError("training=True requires a PRNG key for eps")
        # Lane-dense eps generated directly at padded width: one clean DMA stream.
        eps = jax.random.normal(key, (B, LP), dtype=jnp.float32)
        out = pl.pallas_call(
            _lambda_train_kernel,
            out_shape=jax.ShapeDtypeStruct((3, B, LP), jnp.float32),
            grid=(nb,),
            in_specs=[x_spec, w_spec, b_spec,
                      pl.BlockSpec((bb, LP), lambda i: (i, 0))],
            out_specs=pl.BlockSpec((3, bb, LP), lambda i: (0, i, 0)),
            compiler_params=cparams,
        )(x, w_cat, b_cat, eps)
        out = out[:, :, :L]
        return out[0], out[1], out[2]           # z, mean, logvar

    out = pl.pallas_call(
        _lambda_eval_kernel,
        out_shape=jax.ShapeDtypeStruct((2, B, LP), jnp.float32),
        grid=(nb,),
        in_specs=[x_spec, w_spec, b_spec],
        out_specs=pl.BlockSpec((2, bb, LP), lambda i: (0, i, 0)),
        compiler_params=cparams,
    )(x, w_cat, b_cat)
    out = out[:, :, :L]
    return out[0], out[1]                       # mean, logvar


# ---------------------------------------------------------------------------
# Self-test
# ---------------------------------------------------------------------------

def _xavier_uniform(key, out_features, in_features):
    # Matches nn.init.xavier_uniform_ (gain=1): U(-a, a), a = sqrt(6/(fan_in+fan_out))
    a = math.sqrt(6.0 / (in_features + out_features))
    return jax.random.uniform(key, (out_features, in_features),
                              minval=-a, maxval=a, dtype=jnp.float32)


if __name__ == "__main__":
    hidden_size = 32
    latent_length = 20
    batch = 8

    key = jax.random.PRNGKey(0)
    k_x, k_wm, k_wv, k_bm, k_bv, k_eps = jax.random.split(key, 6)

    # Deterministic parameter init (module __init__ semantics).
    w_mean = _xavier_uniform(k_wm, latent_length, hidden_size)
    w_logvar = _xavier_uniform(k_wv, latent_length, hidden_size)
    bound = 1.0 / math.sqrt(hidden_size)
    b_mean = jax.random.uniform(k_bm, (latent_length,), minval=-bound, maxval=bound)
    b_logvar = jax.random.uniform(k_bv, (latent_length,), minval=-bound, maxval=bound)

    x = jax.random.normal(k_x, (batch, hidden_size), dtype=jnp.float32)

    # One-time parameter layout (kept out of the per-call hot path).
    params = prepare_lambda_params(w_mean, b_mean, w_logvar, b_logvar)

    # Training-mode forward.
    z, latent_mean, latent_logvar = lambda_forward(x, params, key=k_eps, training=True)
    jax.block_until_ready((z, latent_mean, latent_logvar))

    # Eval-mode forward (slim kernel).
    eval_mean, eval_logvar = lambda_forward(x, params, training=False)
    jax.block_until_ready((eval_mean, eval_logvar))

    # Pure-JAX reference.
    ref_mean = x @ w_mean.T + b_mean
    ref_logvar = x @ w_logvar.T + b_logvar
    eps = jax.random.normal(k_eps, (batch, params["latent_padded"]),
                            dtype=jnp.float32)[:, :latent_length]
    ref_z = eps * jnp.exp(0.5 * ref_logvar) + ref_mean

    assert jnp.allclose(latent_mean, ref_mean, atol=1e-5, rtol=1e-5)
    assert jnp.allclose(latent_logvar, ref_logvar, atol=1e-5, rtol=1e-5)
    assert jnp.allclose(z, ref_z, atol=1e-5, rtol=1e-5)
    assert jnp.allclose(eval_mean, ref_mean, atol=1e-5, rtol=1e-5)
    assert jnp.allclose(eval_logvar, ref_logvar, atol=1e-5, rtol=1e-5)

    print("KERNEL_OK")
</pallas_src>

<mosaic_0001>
module attributes {stable_mosaic.version = 11 : i64} {
  func.func @_lambda_train_kernel(%arg0: i32, %arg1: memref<8x32xf32, #tpu.memory_space<vmem>>, %arg2: memref<32x256xf32, #tpu.memory_space<vmem>>, %arg3: memref<1x256xf32, #tpu.memory_space<vmem>>, %arg4: memref<8x128xf32, #tpu.memory_space<vmem>>, %arg5: memref<3x8x128xf32, #tpu.memory_space<vmem>>) attributes {dimension_semantics = [#tpu.dimension_semantics<parallel>], iteration_bounds = array<i64: 1>, scalar_prefetch = 0 : i64, scratch_operands = 0 : i64, tpu.core_type = #tpu.core_type<tc>, window_params = [{transform_indices = @transform_0, window_bounds = array<i64: 8, 32>}, {pipeline_mode = #tpu.pipeline_mode<synchronous>, transform_indices = @transform_1, window_bounds = array<i64: 32, 256>}, {pipeline_mode = #tpu.pipeline_mode<synchronous>, transform_indices = @transform_2, window_bounds = array<i64: 1, 256>}, {transform_indices = @transform_3, window_bounds = array<i64: 8, 128>}, {transform_indices = @transform_4, window_bounds = array<i64: 3, 8, 128>}]} {
    %c0 = arith.constant 0 : index
    %c0_0 = arith.constant 0 : index
    %0 = vector.load %arg1[%c0, %c0_0] : memref<8x32xf32, #tpu.memory_space<vmem>>, vector<8x32xf32>
    %c0_1 = arith.constant 0 : index
    %c0_2 = arith.constant 0 : index
    %1 = vector.load %arg2[%c0_1, %c0_2] : memref<32x256xf32, #tpu.memory_space<vmem>>, vector<32x256xf32>
    %cst = arith.constant dense<0.000000e+00> : vector<8x256xf32>
    %2 = tpu.matmul %0, %1, %cst {dimension_numbers = #tpu.dot_dimension_numbers<[1], [0], [0], [1], [0, 0, 1, 1], [], []>} : vector<8x32xf32>, vector<32x256xf32>, vector<8x256xf32> -> vector<8x256xf32>
    %c0_3 = arith.constant 0 : index
    %c0_4 = arith.constant 0 : index
    %3 = vector.load %arg3[%c0_3, %c0_4] : memref<1x256xf32, #tpu.memory_space<vmem>>, vector<1x256xf32>
    %4 = vector.broadcast %3 : vector<1x256xf32> to vector<8x256xf32>
    %5 = arith.addf %2, %4 : vector<8x256xf32>
    %6 = vector.extract_strided_slice %5 {offsets = [0, 0], sizes = [8, 128], strides = [1, 1]} : vector<8x256xf32> to vector<8x128xf32>
    %7 = vector.extract_strided_slice %5 {offsets = [0, 128], sizes = [8, 128], strides = [1, 1]} : vector<8x256xf32> to vector<8x128xf32>
    %c0_5 = arith.constant 0 : index
    %c0_6 = arith.constant 0 : index
    %8 = vector.load %arg4[%c0_5, %c0_6] : memref<8x128xf32, #tpu.memory_space<vmem>>, vector<8x128xf32>
    %cst_7 = arith.constant 5.000000e-01 : f32
    %9 = vector.broadcast %cst_7 : f32 to vector<8x128xf32>
    %10 = arith.mulf %9, %7 : vector<8x128xf32>
    %11 = math.exp %10 : vector<8x128xf32>
    %12 = arith.mulf %8, %11 : vector<8x128xf32>
    %13 = arith.addf %12, %6 : vector<8x128xf32>
    %c0_8 = arith.constant 0 : index
    %c0_9 = arith.constant 0 : index
    %c0_10 = arith.constant 0 : index
    %14 = vector.load %arg5[%c0_8, %c0_9, %c0_10] : memref<3x8x128xf32, #tpu.memory_space<vmem>>, vector<1x8x128xf32>
    %15 = vector.shape_cast %14 : vector<1x8x128xf32> to vector<8x128xf32>
    %16 = vector.shape_cast %13 : vector<8x128xf32> to vector<1x8x128xf32>
    tpu.vector_store %arg5[%c0_8, %c0_9, %c0_10], %16 {strides = array<i32>} : memref<3x8x128xf32, #tpu.memory_space<vmem>>, vector<1x8x128xf32>,
    %c1 = arith.constant 1 : index
    %c0_11 = arith.constant 0 : index
    %c0_12 = arith.constant 0 : index
    %17 = vector.load %arg5[%c1, %c0_11, %c0_12] : memref<3x8x128xf32, #tpu.memory_space<vmem>>, vector<1x8x128xf32>
    %18 = vector.shape_cast %17 : vector<1x8x128xf32> to vector<8x128xf32>
    %19 = vector.shape_cast %6 : vector<8x128xf32> to vector<1x8x128xf32>
    tpu.vector_store %arg5[%c1, %c0_11, %c0_12], %19 {strides = array<i32>} : memref<3x8x128xf32, #tpu.memory_space<vmem>>, vector<1x8x128xf32>,
    %c2 = arith.constant 2 : index
    %c0_13 = arith.constant 0 : index
    %c0_14 = arith.constant 0 : index
    %20 = vector.load %arg5[%c2, %c0_13, %c0_14] : memref<3x8x128xf32, #tpu.memory_space<vmem>>, vector<1x8x128xf32>
    %21 = vector.shape_cast %20 : vector<1x8x128xf32> to vector<8x128xf32>
    %22 = vector.shape_cast %7 : vector<8x128xf32> to vector<1x8x128xf32>
    tpu.vector_store %arg5[%c2, %c0_13, %c0_14], %22 {strides = array<i32>} : memref<3x8x128xf32, #tpu.memory_space<vmem>>, vector<1x8x128xf32>,
    return
  }
  func.func @transform_0(%arg0: i32) -> (i32, i32) {
    %c0_i32 = arith.constant 0 : i32
    %c0_i32_0 = arith.constant 0 : i32
    return %arg0, %c0_i32 : i32, i32
  }
  func.func @transform_1(%arg0: i32) -> (i32, i32) {
    %c0_i32 = arith.constant 0 : i32
    %c0_i32_0 = arith.constant 0 : i32
    %c0_i32_1 = arith.constant 0 : i32
    return %c0_i32, %c0_i32_0 : i32, i32
  }
  func.func @transform_2(%arg0: i32) -> (i32, i32) {
    %c0_i32 = arith.constant 0 : i32
    %c0_i32_0 = arith.constant 0 : i32
    %c0_i32_1 = arith.constant 0 : i32
    return %c0_i32, %c0_i32_0 : i32, i32
  }
  func.func @transform_3(%arg0: i32) -> (i32, i32) {
    %c0_i32 = arith.constant 0 : i32
    %c0_i32_0 = arith.constant 0 : i32
    return %arg0, %c0_i32 : i32, i32
  }
  func.func @transform_4(%arg0: i32) -> (i32, i32, i32) {
    %c0_i32 = arith.constant 0 : i32
    %c0_i32_0 = arith.constant 0 : i32
    %c0_i32_1 = arith.constant 0 : i32
    return %c0_i32, %arg0, %c0_i32_0 : i32, i32, i32
  }
}

</mosaic_0001>

<llo_original>
// kernel: tpu_custom_call.1
$region0: #{tpu_custom_call.1}
  #allocation0 [shape = 'u32[]', space=smem, size = 0x4, offset = 0x4, fixed_abs, tag = 'smem constant byte address 0x4 - core index']
  #allocation1 [shape = 'u32[144,128]{1,0:T(1,128)}', space=vmem, size = 0x12000, scoped, tag = 'internal scratch']
  %s0 = inlined_call_operand.hbm [shape: f32[8,32], index: 0, kind: input, shape index: {}]
  %s1 = inlined_call_operand.hbm [shape: f32[32,256], index: 1, kind: input, shape index: {}]
  %s2 = inlined_call_operand.vmem [shape: f32[1,256], index: 2, kind: input, shape index: {}]
  %s3 = inlined_call_operand.hbm [shape: f32[8,128], index: 3, kind: input, shape index: {}]
  %s4 = inlined_call_operand.hbm [shape: f32[3,8,128], index: 4, kind: output, shape index: {}]
  %s5 = sld [smem:[#allocation0]]
  $region38: #{tpu_custom_call.1} parent=0
    _
  %s7 = ssub.s32 1, %s5
  %s8 = scalar_select 0, %s7, %s5
  $region1: #{tpu_custom_call.1} parent=0
    #allocation2 [shape = 'u8[4096]{0}', space=vmem, size = 0x1000, scoped, tag = 'input window, operand 0, single buffered']
    #allocation3 [shape = 's32[1]{0}', space=sflag, size = 0x4, scoped, tag = 'scoped memory for tpu_custom_call.1']
    #allocation4 [shape = 's32[1]{0}', space=sflag, size = 0x4, scoped, tag = 'scoped memory for tpu_custom_call.1']
    #allocation5 [shape = 'u8[32768]{0}', space=vmem, size = 0x8000, scoped, tag = 'input window, operand 1, single buffered']
    #allocation6 [shape = 's32[1]{0}', space=sflag, size = 0x4, scoped, tag = 'scoped memory for tpu_custom_call.1']
    #allocation7 [shape = 'u8[4096]{0}', space=vmem, size = 0x1000, scoped, tag = 'input window, operand 3, single buffered']
    #allocation8 [shape = 'u8[12288]{0}', space=vmem, size = 0x3000, scoped, tag = 'output window, operand 0, single buffered']
    %9 = vsyncpa [#allocation3], 0
    %10 = vsyncpa [#allocation6], 0
    %11 = vsyncpa [#allocation4], 0
    // Predicated region
    $region2: #{tpu_custom_call.1} parent=1 // pred_check
      _
    $region3: #{tpu_custom_call.1} parent=1 // pred_check_branch
      %13 = sbr.rel (0) target = $region5
    $region4: #{tpu_custom_call.1} parent=1 // pred_region
      %s15 = ssub.s32 128, 128
      %16 = vsyncadd [#allocation3], %s15
      %s18 = sshll.u32 [#allocation2], 4
      %s19 = int_to_ptr.vmem [resolvable:$true] %s18
      %21 = dma.hbm_to_vmem [thread:$0]  %s0, 128, %s19, [#allocation3]
    $region5: #{tpu_custom_call.1} parent=1 // pred_fallthru
      _
    // Predicated region
    $region6: #{tpu_custom_call.1} parent=1 // pred_check
      _
    $region7: #{tpu_custom_call.1} parent=1 // pred_check_branch
      %23 = sbr.rel (0) target = $region9
    $region8: #{tpu_custom_call.1} parent=1 // pred_region
      %s25 = ssub.s32 1024, 1024
      %26 = vsyncadd [#allocation6], %s25
      %s27 = sshll.u32 [#allocation5], 4
      %s28 = int_to_ptr.vmem [resolvable:$true] %s27
      %33 = dma.hbm_to_vmem [thread:$0]  %s1, 1024, %s28, [#allocation6], 256, 256, 16
    $region9: #{tpu_custom_call.1} parent=1 // pred_fallthru
      _
    // Predicated region
    $region10: #{tpu_custom_call.1} parent=1 // pred_check
      _
    $region11: #{tpu_custom_call.1} parent=1 // pred_check_branch
      %35 = sbr.rel (0) target = $region13
    $region12: #{tpu_custom_call.1} parent=1 // pred_region
      _
    $region13: #{tpu_custom_call.1} parent=1 // pred_fallthru
      _
    // Predicated region
    $region14: #{tpu_custom_call.1} parent=1 // pred_check
      _
    $region15: #{tpu_custom_call.1} parent=1 // pred_check_branch
      %37 = sbr.rel (0) target = $region17
    $region16: #{tpu_custom_call.1} parent=1 // pred_region
      %s39 = ssub.s32 128, 128
      %40 = vsyncadd [#allocation6], %s39
      %s42 = sshll.u32 [#allocation7], 4
      %s43 = int_to_ptr.vmem [resolvable:$true] %s42
      %45 = dma.hbm_to_vmem [thread:$0]  %s3, 128, %s43, [#allocation6]
    $region17: #{tpu_custom_call.1} parent=1 // pred_fallthru
      _
    // Predicated region
    $region18: #{tpu_custom_call.1} parent=1 // pred_check
      _
    $region19: #{tpu_custom_call.1} parent=1 // pred_check_branch
      %47 = sbr.rel (0) target = $region21
    $region20: #{tpu_custom_call.1} parent=1 // pred_region
      %48 = dma.done [#allocation3], 128
    $region21: #{tpu_custom_call.1} parent=1 // pred_fallthru
      _
    // Predicated region
    $region22: #{tpu_custom_call.1} parent=1 // pred_check
      _
    $region23: #{tpu_custom_call.1} parent=1 // pred_check_branch
      %50 = sbr.rel (0) target = $region25
    $region24: #{tpu_custom_call.1} parent=1 // pred_region
      %51 = dma.done [#allocation6], 1024
    $region25: #{tpu_custom_call.1} parent=1 // pred_fallthru
      _
    // Predicated region
    $region26: #{tpu_custom_call.1} parent=1 // pred_check
      _
    $region27: #{tpu_custom_call.1} parent=1 // pred_check_branch
      %53 = sbr.rel (0) target = $region29
    $region28: #{tpu_custom_call.1} parent=1 // pred_region
      %54 = dma.done [#allocation6], 128
    $region29: #{tpu_custom_call.1} parent=1 // pred_fallthru
      _
    %v55 = vld [vmem:[#allocation2] sm:$0xff]
    %v56 = vld [vmem:[#allocation5] sm:$0xff]
    %v57 = vld [vmem:[#allocation5 + $0x8] sm:$0xff]
    %v58 = vld [vmem:[#allocation5 + $0x10] sm:$0xff]
    %v59 = vld [vmem:[#allocation5 + $0x18] sm:$0xff]
    %v60 = vld [vmem:[#allocation5 + $0x20] sm:$0xff]
    %v61 = vld [vmem:[#allocation5 + $0x28] sm:$0xff]
    %v62 = vld [vmem:[#allocation5 + $0x30] sm:$0xff]
    %v63 = vld [vmem:[#allocation5 + $0x38] sm:$0xff]
    %v64 = vld [vmem:[%s2] sm:$0x3]
    %v66 = vlaneseq
    %v67 = vshrl.u32 %v66, 7
    %v68 = vsub.s32 0, %v67
    %v69 = vrot.slane %v64, %v68
    %v70 = vlaneseq
    %v71 = vshrl.u32 %v70, 7
    %v72 = vsub.s32 1, %v71
    %v73 = vrot.slane %v64, %v72
    %vm76 = vcmask 261120
    %v78 = vsel %vm76, %v55, 0
    %80 = vmatprep.subr.mxu0 0.0
    %81 = vmatpush1.msra.mxu0 0.0
    %82 = vmatprep.subr.mxu0 0.0
    %83 = vmatpush1.msra.mxu0 0.0
    %84 = vmatprep.subr.mxu0 0.0
    %85 = vmatpush1.msra.mxu0 0.0
    %86 = vmatprep.subr.mxu0 0.0
    %87 = vmatpush1.msra.mxu0 0.0
    %88 = vmatprep.subr.mxu0 0.0
    %89 = vmatpush1.msra.mxu0 0.0
    %90 = vmatprep.subr.mxu0 0.0
    %91 = vmatpush1.msra.mxu0 0.0
    %92 = vmatprep.subr.mxu0 0.0
    %93 = vmatpush1.msra.mxu0 0.0
    %94 = vmatprep.subr.mxu0 0.0
    %95 = vmatpush1.msra.mxu0 0.0
    %96 = vmatprep.subr.mxu0 0.0
    %97 = vmatpush1.msra.mxu0 0.0
    %98 = vmatprep.subr.mxu0 0.0
    %99 = vmatpush1.msra.mxu0 0.0
    %100 = vmatprep.subr.mxu0 0.0
    %101 = vmatpush1.msra.mxu0 0.0
    %102 = vmatprep.subr.mxu0 0.0
    %103 = vmatpush1.msra.mxu0 0.0
    %104 = vmatprep.subr.mxu0 %v63
    %105 = vmatpush1.msra.mxu0 %v62
    %106 = vmatprep.subr.mxu0 %v61
    %107 = vmatpush1.msra.mxu0 %v60
    %108 = vmatprep.subr.mxu0 %v59
    %109 = vmatpush1.msra.mxu0 %v58
    %110 = vmatprep.subr.mxu0 %v57
    %111 = vmatpush1.msra.mxu0 %v56
    %112 = vmatprep.subr.mxu0 0.0
    %113 = vmatpush2.msra.mxu0 0.0
    %114 = vmatprep.subr.mxu0 0.0
    %115 = vmatpush2.msra.mxu0 0.0
    %116 = vmatprep.subr.mxu0 0.0
    %117 = vmatpush2.msra.mxu0 0.0
    %118 = vmatprep.subr.mxu0 0.0
    %119 = vmatpush2.msra.mxu0 0.0
    %120 = vmatprep.subr.mxu0 0.0
    %121 = vmatpush2.msra.mxu0 0.0
    %122 = vmatprep.subr.mxu0 0.0
    %123 = vmatpush2.msra.mxu0 0.0
    %124 = vmatprep.subr.mxu0 0.0
    %125 = vmatpush2.msra.mxu0 0.0
    %126 = vmatprep.subr.mxu0 0.0
    %127 = vmatpush2.msra.mxu0 0.0
    %128 = vmatprep.subr.mxu0 0.0
    %129 = vmatpush2.msra.mxu0 0.0
    %130 = vmatprep.subr.mxu0 0.0
    %131 = vmatpush2.msra.mxu0 0.0
    %132 = vmatprep.subr.mxu0 0.0
    %133 = vmatpush2.msra.mxu0 0.0
    %134 = vmatprep.subr.mxu0 0.0
    %135 = vmatpush2.msra.mxu0 0.0
    %136 = vmatprep.subr.mxu0 0.0
    %137 = vmatpush2.msra.mxu0 0.0
    %138 = vmatprep.subr.mxu0 0.0
    %139 = vmatpush2.msra.mxu0 0.0
    %140 = vmatprep.subr.mxu0 0.0
    %141 = vmatpush2.msra.mxu0 0.0
    %142 = vmatprep.subr.mxu0 0.0
    %143 = vmatpush2.msra.mxu0 0.0
    %144 = vmatprep.mubr.f32.mxu0 0.0
    %145 = vmatmul.mubr.f32.gmra.mxu0 %v78
    %v146 = vpop.f32.mrf.mxu0
    %v147 = vadd.f32 %v69, %v146
    %v148 = vpop.f32.mrf.mxu0
    %v149 = vadd.f32 %v73, %v148
    %150 = vdwg.mxu0
    %v151 = vld [vmem:[#allocation7] sm:$0xff]
    %v152 = vmul.f32 %v149, 0.5
    %v153 = vmul.f32 %v152, 1.442695
    %v154 = vpow.pop %v153
    %v155 = vmul.f32 %v151, %v154
    %v156 = vadd.f32 %v155, %v147
    %157 = vst [vmem:[#allocation8] sm:$0xff] %v156
    %s158 = scalar_lea.vmem [#allocation8], 8
    %159 = vst [vmem:[%s158] sm:$0xff] %v147
    %s160 = scalar_lea.vmem [#allocation8], 16
    %161 = vst [vmem:[%s160] sm:$0xff] %v149
    // Predicated region
    $region30: #{tpu_custom_call.1} parent=1 // pred_check
      _
    $region31: #{tpu_custom_call.1} parent=1 // pred_check_branch
      %163 = sbr.rel (0) target = $region33
    $region32: #{tpu_custom_call.1} parent=1 // pred_region
      %s165 = ssub.s32 384, 384
      %166 = vsyncadd [#allocation4], %s165
      %s167 = sshll.u32 [#allocation8], 4
      %s168 = int_to_ptr.vmem [resolvable:$true] %s167
      %173 = dma.vmem_to_hbm [thread:$0]  %s168, 384, %s4, [#allocation4], 128, 128, 8
    $region33: #{tpu_custom_call.1} parent=1 // pred_fallthru
      _
    // Predicated region
    $region34: #{tpu_custom_call.1} parent=1 // pred_check
      _
    $region35: #{tpu_custom_call.1} parent=1 // pred_check_branch
      %175 = sbr.rel (0) target = $region37
    $region36: #{tpu_custom_call.1} parent=1 // pred_region
      %176 = dma.done [#allocation4], 384
    $region37: #{tpu_custom_call.1} parent=1 // pred_fallthru
      _
    %177 = vsyncpa [#allocation3], 1
    %178 = vsyncpa [#allocation6], 1
    %179 = vsyncpa [#allocation4], 1

</llo_original>
